<compile_context>
chip_gen: v5e
topology: v5e:2x2
jax: 0.10.0
libtpu: 0.0.40
codegen_flags: <defaults>
</compile_context>

<pallas_src>
import jax
import jax.numpy as jnp
from jax.experimental import pallas as pl
from jax.experimental.pallas import tpu as pltpu


def mlp_kernel(x_ref, w1_ref, b1_ref, w2_ref, b2_ref, w3_ref, b3_ref,
               w4_ref, b4_ref, w5_ref, b5_ref, o_ref):
    # Batch-in-lanes: every activation is (features, TILE_N).
    x = x_ref[...]                                         # (1, TILE_N) f32

    # Layer 1 (K=1): outer product -> broadcast multiply on the VPU, sigmoid
    # on the EUP.  w1t: (20, 1), b1: (20, 1).
    h1 = jax.nn.sigmoid(w1_ref[...] * x + b1_ref[...])     # (20, TILE_N)

    # Layers 2-4: weight-stationary f32 MXU matmuls, (D_out, D_in) @ (D_in, T),
    # f32 accumulation; bias + relu on the VPU.
    h2 = jnp.dot(w2_ref[...], h1,
                 preferred_element_type=jnp.float32) + b2_ref[...]
    h2 = jnp.maximum(h2, 0.0)                              # (64, TILE_N)

    h3 = jnp.dot(w3_ref[...], h2,
                 preferred_element_type=jnp.float32) + b3_ref[...]
    h3 = jnp.maximum(h3, 0.0)                              # (256, TILE_N)

    h4 = jnp.dot(w4_ref[...], h3,
                 preferred_element_type=jnp.float32) + b4_ref[...]
    h4 = jnp.maximum(h4, 0.0)                              # (64, TILE_N)

    # Layer 5 (output width 1): contract the 64 feature rows via broadcast
    # multiply + sublane reduction (XLU); result stays lane-dense.
    o_ref[...] = (jnp.sum(w5_ref[...] * h4, axis=0, keepdims=True)
                  + b5_ref[...])                           # (1, TILE_N)


def _pick_tile(n):
    # Lane-dense tiles must be a multiple of 128.  Prefer large tiles to
    # amortize per-grid-step overhead, but keep >= 4 grid steps when possible
    # so v7x's two TensorCores both get work from the "parallel" axis.
    for t in (2048, 1024, 512):
        if n >= 4 * t:
            return t
    return 256


def net_forward(x, params):
    """x: (N, 1) float32.  params: dict of w1..w5 / b1..b5 (float32)."""
    n = x.shape[0]
    tile = _pick_tile(n)
    n_pad = ((n + tile - 1) // tile) * tile

    # Batch-in-lanes: x becomes a single lane-dense row (1, n_pad).
    x_row = x.reshape(1, n).astype(jnp.float32)
    if n_pad != n:
        x_row = jnp.pad(x_row, ((0, 0), (0, n_pad - n)))

    # Transposed operands: weights as (D_out, D_in) LHS, biases as columns.
    w1 = params["w1"].T.astype(jnp.float32)                # (20, 1)
    b1 = params["b1"].reshape(-1, 1).astype(jnp.float32)   # (20, 1)
    w2 = params["w2"].T.astype(jnp.float32)                # (64, 20)
    b2 = params["b2"].reshape(-1, 1).astype(jnp.float32)   # (64, 1)
    w3 = params["w3"].T.astype(jnp.float32)                # (256, 64)
    b3 = params["b3"].reshape(-1, 1).astype(jnp.float32)   # (256, 1)
    w4 = params["w4"].T.astype(jnp.float32)                # (64, 256)
    b4 = params["b4"].reshape(-1, 1).astype(jnp.float32)   # (64, 1)
    w5 = params["w5"].astype(jnp.float32)                  # (64, 1) column
    b5 = params["b5"].reshape(1, 1).astype(jnp.float32)    # (1, 1)

    consts = (w1, b1, w2, b2, w3, b3, w4, b4, w5, b5)

    def const_spec(arr):
        # Full-array block, constant index_map -> loaded once, VMEM-resident
        # across all grid steps (no re-DMA since the block index is constant).
        return pl.BlockSpec(arr.shape, lambda i: (0, 0))

    grid = (n_pad // tile,)

    flops = 2 * n_pad * (1 * 20 + 20 * 64 + 64 * 256 + 256 * 64 + 64 * 1)
    bytes_accessed = (n_pad * 4 + n_pad * 4
                      + sum(int(a.size) * a.dtype.itemsize for a in consts))

    out = pl.pallas_call(
        mlp_kernel,
        out_shape=jax.ShapeDtypeStruct((1, n_pad), jnp.float32),
        grid=grid,
        in_specs=[
            pl.BlockSpec((1, tile), lambda i: (0, i)),     # x: lane-dense row
        ] + [const_spec(a) for a in consts],
        out_specs=pl.BlockSpec((1, tile), lambda i: (0, i)),  # lane-dense out
        compiler_params=pltpu.CompilerParams(
            dimension_semantics=("parallel",),             # megacore on v7x
            vmem_limit_bytes=32 * 1024 * 1024,             # safe on all gens
        ),
        cost_estimate=pl.CostEstimate(
            flops=flops,
            transcendentals=20 * n_pad,                    # sigmoid
            bytes_accessed=bytes_accessed,
        ),
    )(x_row, *consts)

    return out[0, :n].reshape(n, 1)


def init_params(key):
    ks = jax.random.split(key, 5)
    return {
        "w1": jax.random.normal(ks[0], (1, 20), jnp.float32),
        "b1": jnp.zeros((20,), jnp.float32),
        "w2": jax.random.normal(ks[1], (20, 64), jnp.float32),
        "b2": jnp.zeros((64,), jnp.float32),
        "w3": jax.random.normal(ks[2], (64, 256), jnp.float32),
        "b3": jnp.zeros((256,), jnp.float32),
        "w4": jax.random.normal(ks[3], (256, 64), jnp.float32),
        "b4": jnp.zeros((64,), jnp.float32),
        "w5": jax.random.normal(ks[4], (64, 1), jnp.float32),
        "b5": jnp.zeros((1,), jnp.float32),
    }


def reference_forward(x, p):
    h1 = jax.nn.sigmoid(x @ p["w1"] + p["b1"])
    h2 = jax.nn.relu(h1 @ p["w2"] + p["b2"])
    h3 = jax.nn.relu(h2 @ p["w3"] + p["b3"])
    h4 = jax.nn.relu(h3 @ p["w4"] + p["b4"])
    return h4 @ p["w5"] + p["b5"]


if __name__ == "__main__":
    key = jax.random.PRNGKey(0)
    params = init_params(key)

    # Same input as the PyTorch script: arange(-10, 10) reshaped to (20, 1).
    x = jnp.arange(-10, 10, dtype=jnp.float32).reshape(20, 1)

    out = jax.block_until_ready(net_forward(x, params))
    assert out.shape == (20, 1)

    # f32 kernel vs f32 reference.  The MXU's default f32 matmul precision can
    # still be slightly below exact f32, so compare with a modest relative
    # tolerance (much tighter than the old bf16 5e-2 bound).
    ref = reference_forward(x, params)
    max_err = float(jnp.max(jnp.abs(out - ref)))
    scale = float(jnp.max(jnp.abs(ref))) + 1e-6
    assert max_err / scale < 2e-2, (
        f"relative error too large: abs={max_err}, scale={scale}")

    print("KERNEL_OK")
</pallas_src>

<mosaic_0001>
module attributes {stable_mosaic.version = 11 : i64} {
  func.func @mlp_kernel(%arg0: i32, %arg1: memref<1x256xf32, #tpu.memory_space<vmem>>, %arg2: memref<20x1xf32, #tpu.memory_space<vmem>>, %arg3: memref<20x1xf32, #tpu.memory_space<vmem>>, %arg4: memref<64x20xf32, #tpu.memory_space<vmem>>, %arg5: memref<64x1xf32, #tpu.memory_space<vmem>>, %arg6: memref<256x64xf32, #tpu.memory_space<vmem>>, %arg7: memref<256x1xf32, #tpu.memory_space<vmem>>, %arg8: memref<64x256xf32, #tpu.memory_space<vmem>>, %arg9: memref<64x1xf32, #tpu.memory_space<vmem>>, %arg10: memref<64x1xf32, #tpu.memory_space<vmem>>, %arg11: memref<1x1xf32, #tpu.memory_space<vmem>>, %arg12: memref<1x256xf32, #tpu.memory_space<vmem>>) attributes {dimension_semantics = [#tpu.dimension_semantics<parallel>], iteration_bounds = array<i64: 1>, scalar_prefetch = 0 : i64, scratch_operands = 0 : i64, tpu.core_type = #tpu.core_type<tc>, window_params = [{transform_indices = @transform_0, window_bounds = array<i64: 1, 256>}, {pipeline_mode = #tpu.pipeline_mode<synchronous>, transform_indices = @transform_1, window_bounds = array<i64: 20, 1>}, {pipeline_mode = #tpu.pipeline_mode<synchronous>, transform_indices = @transform_2, window_bounds = array<i64: 20, 1>}, {pipeline_mode = #tpu.pipeline_mode<synchronous>, transform_indices = @transform_3, window_bounds = array<i64: 64, 20>}, {pipeline_mode = #tpu.pipeline_mode<synchronous>, transform_indices = @transform_4, window_bounds = array<i64: 64, 1>}, {pipeline_mode = #tpu.pipeline_mode<synchronous>, transform_indices = @transform_5, window_bounds = array<i64: 256, 64>}, {pipeline_mode = #tpu.pipeline_mode<synchronous>, transform_indices = @transform_6, window_bounds = array<i64: 256, 1>}, {pipeline_mode = #tpu.pipeline_mode<synchronous>, transform_indices = @transform_7, window_bounds = array<i64: 64, 256>}, {pipeline_mode = #tpu.pipeline_mode<synchronous>, transform_indices = @transform_8, window_bounds = array<i64: 64, 1>}, {pipeline_mode = #tpu.pipeline_mode<synchronous>, transform_indices = @transform_9, window_bounds = array<i64: 64, 1>}, {pipeline_mode = #tpu.pipeline_mode<synchronous>, transform_indices = @transform_10, window_bounds = array<i64: 1, 1>}, {transform_indices = @transform_11, window_bounds = array<i64: 1, 256>}]} {
    %c0 = arith.constant 0 : index
    %c0_0 = arith.constant 0 : index
    %0 = vector.load %arg1[%c0, %c0_0] : memref<1x256xf32, #tpu.memory_space<vmem>>, vector<1x256xf32>
    %c0_1 = arith.constant 0 : index
    %c0_2 = arith.constant 0 : index
    %1 = vector.load %arg2[%c0_1, %c0_2] : memref<20x1xf32, #tpu.memory_space<vmem>>, vector<20x1xf32>
    %2 = vector.broadcast %1 : vector<20x1xf32> to vector<20x256xf32>
    %3 = vector.broadcast %0 : vector<1x256xf32> to vector<20x256xf32>
    %4 = arith.mulf %2, %3 : vector<20x256xf32>
    %c0_3 = arith.constant 0 : index
    %c0_4 = arith.constant 0 : index
    %5 = vector.load %arg3[%c0_3, %c0_4] : memref<20x1xf32, #tpu.memory_space<vmem>>, vector<20x1xf32>
    %6 = vector.broadcast %5 : vector<20x1xf32> to vector<20x256xf32>
    %7 = arith.addf %4, %6 : vector<20x256xf32>
    %8 = arith.negf %7 : vector<20x256xf32>
    %9 = math.exp %8 : vector<20x256xf32>
    %cst = arith.constant 1.000000e+00 : f32
    %10 = vector.broadcast %cst : f32 to vector<20x256xf32>
    %11 = arith.addf %10, %9 : vector<20x256xf32>
    %12 = arith.divf %10, %11 : vector<20x256xf32>
    %c0_5 = arith.constant 0 : index
    %c0_6 = arith.constant 0 : index
    %13 = vector.load %arg4[%c0_5, %c0_6] : memref<64x20xf32, #tpu.memory_space<vmem>>, vector<64x20xf32>
    %cst_7 = arith.constant dense<0.000000e+00> : vector<64x256xf32>
    %14 = tpu.matmul %13, %12, %cst_7 {dimension_numbers = #tpu.dot_dimension_numbers<[1], [0], [0], [1], [0, 0, 1, 1], [], []>} : vector<64x20xf32>, vector<20x256xf32>, vector<64x256xf32> -> vector<64x256xf32>
    %c0_8 = arith.constant 0 : index
    %c0_9 = arith.constant 0 : index
    %15 = vector.load %arg5[%c0_8, %c0_9] : memref<64x1xf32, #tpu.memory_space<vmem>>, vector<64x1xf32>
    %16 = vector.broadcast %15 : vector<64x1xf32> to vector<64x256xf32>
    %17 = arith.addf %14, %16 : vector<64x256xf32>
    %cst_10 = arith.constant 0.000000e+00 : f32
    %18 = vector.broadcast %cst_10 : f32 to vector<64x256xf32>
    %19 = arith.maximumf %17, %18 : vector<64x256xf32>
    %c0_11 = arith.constant 0 : index
    %c0_12 = arith.constant 0 : index
    %20 = vector.load %arg6[%c0_11, %c0_12] : memref<256x64xf32, #tpu.memory_space<vmem>>, vector<256x64xf32>
    %cst_13 = arith.constant dense<0.000000e+00> : vector<256x256xf32>
    %21 = tpu.matmul %20, %19, %cst_13 {dimension_numbers = #tpu.dot_dimension_numbers<[1], [0], [0], [1], [0, 0, 1, 1], [], []>} : vector<256x64xf32>, vector<64x256xf32>, vector<256x256xf32> -> vector<256x256xf32>
    %c0_14 = arith.constant 0 : index
    %c0_15 = arith.constant 0 : index
    %22 = vector.load %arg7[%c0_14, %c0_15] : memref<256x1xf32, #tpu.memory_space<vmem>>, vector<256x1xf32>
    %23 = vector.broadcast %22 : vector<256x1xf32> to vector<256x256xf32>
    %24 = arith.addf %21, %23 : vector<256x256xf32>
    %cst_16 = arith.constant 0.000000e+00 : f32
    %25 = vector.broadcast %cst_16 : f32 to vector<256x256xf32>
    %26 = arith.maximumf %24, %25 : vector<256x256xf32>
    %c0_17 = arith.constant 0 : index
    %c0_18 = arith.constant 0 : index
    %27 = vector.load %arg8[%c0_17, %c0_18] : memref<64x256xf32, #tpu.memory_space<vmem>>, vector<64x256xf32>
    %cst_19 = arith.constant dense<0.000000e+00> : vector<64x256xf32>
    %28 = tpu.matmul %27, %26, %cst_19 {dimension_numbers = #tpu.dot_dimension_numbers<[1], [0], [0], [1], [0, 0, 1, 1], [], []>} : vector<64x256xf32>, vector<256x256xf32>, vector<64x256xf32> -> vector<64x256xf32>
    %c0_20 = arith.constant 0 : index
    %c0_21 = arith.constant 0 : index
    %29 = vector.load %arg9[%c0_20, %c0_21] : memref<64x1xf32, #tpu.memory_space<vmem>>, vector<64x1xf32>
    %30 = vector.broadcast %29 : vector<64x1xf32> to vector<64x256xf32>
    %31 = arith.addf %28, %30 : vector<64x256xf32>
    %cst_22 = arith.constant 0.000000e+00 : f32
    %32 = vector.broadcast %cst_22 : f32 to vector<64x256xf32>
    %33 = arith.maximumf %31, %32 : vector<64x256xf32>
    %c0_23 = arith.constant 0 : index
    %c0_24 = arith.constant 0 : index
    %34 = vector.load %arg10[%c0_23, %c0_24] : memref<64x1xf32, #tpu.memory_space<vmem>>, vector<64x1xf32>
    %35 = vector.broadcast %34 : vector<64x1xf32> to vector<64x256xf32>
    %36 = arith.mulf %35, %33 : vector<64x256xf32>
    %cst_25 = arith.constant dense<0.000000e+00> : vector<256xf32>
    %37 = vector.multi_reduction <add>, %36, %cst_25 [0] : vector<64x256xf32> to vector<256xf32>
    %38 = vector.shape_cast %37 : vector<256xf32> to vector<1x256xf32>
    %c0_26 = arith.constant 0 : index
    %c0_27 = arith.constant 0 : index
    %39 = vector.load %arg11[%c0_26, %c0_27] : memref<1x1xf32, #tpu.memory_space<vmem>>, vector<1x1xf32>
    %40 = vector.broadcast %39 : vector<1x1xf32> to vector<1x256xf32>
    %41 = arith.addf %38, %40 : vector<1x256xf32>
    %c0_28 = arith.constant 0 : index
    %c0_29 = arith.constant 0 : index
    %42 = vector.load %arg12[%c0_28, %c0_29] : memref<1x256xf32, #tpu.memory_space<vmem>>, vector<1x256xf32>
    tpu.vector_store %arg12[%c0_28, %c0_29], %41 {strides = array<i32>} : memref<1x256xf32, #tpu.memory_space<vmem>>, vector<1x256xf32>,
    return
  }
  func.func @transform_0(%arg0: i32) -> (i32, i32) {
    %c0_i32 = arith.constant 0 : i32
    %c0_i32_0 = arith.constant 0 : i32
    return %c0_i32, %arg0 : i32, i32
  }
  func.func @transform_1(%arg0: i32) -> (i32, i32) {
    %c0_i32 = arith.constant 0 : i32
    %c0_i32_0 = arith.constant 0 : i32
    %c0_i32_1 = arith.constant 0 : i32
    return %c0_i32, %c0_i32_0 : i32, i32
  }
  func.func @transform_2(%arg0: i32) -> (i32, i32) {
    %c0_i32 = arith.constant 0 : i32
    %c0_i32_0 = arith.constant 0 : i32
    %c0_i32_1 = arith.constant 0 : i32
    return %c0_i32, %c0_i32_0 : i32, i32
  }
  func.func @transform_3(%arg0: i32) -> (i32, i32) {
    %c0_i32 = arith.constant 0 : i32
    %c0_i32_0 = arith.constant 0 : i32
    %c0_i32_1 = arith.constant 0 : i32
    return %c0_i32, %c0_i32_0 : i32, i32
  }
  func.func @transform_4(%arg0: i32) -> (i32, i32) {
    %c0_i32 = arith.constant 0 : i32
    %c0_i32_0 = arith.constant 0 : i32
    %c0_i32_1 = arith.constant 0 : i32
    return %c0_i32, %c0_i32_0 : i32, i32
  }
  func.func @transform_5(%arg0: i32) -> (i32, i32) {
    %c0_i32 = arith.constant 0 : i32
    %c0_i32_0 = arith.constant 0 : i32
    %c0_i32_1 = arith.constant 0 : i32
    return %c0_i32, %c0_i32_0 : i32, i32
  }
  func.func @transform_6(%arg0: i32) -> (i32, i32) {
    %c0_i32 = arith.constant 0 : i32
    %c0_i32_0 = arith.constant 0 : i32
    %c0_i32_1 = arith.constant 0 : i32
    return %c0_i32, %c0_i32_0 : i32, i32
  }
  func.func @transform_7(%arg0: i32) -> (i32, i32) {
    %c0_i32 = arith.constant 0 : i32
    %c0_i32_0 = arith.constant 0 : i32
    %c0_i32_1 = arith.constant 0 : i32
    return %c0_i32, %c0_i32_0 : i32, i32
  }
  func.func @transform_8(%arg0: i32) -> (i32, i32) {
    %c0_i32 = arith.constant 0 : i32
    %c0_i32_0 = arith.constant 0 : i32
    %c0_i32_1 = arith.constant 0 : i32
    return %c0_i32, %c0_i32_0 : i32, i32
  }
  func.func @transform_9(%arg0: i32) -> (i32, i32) {
    %c0_i32 = arith.constant 0 : i32
    %c0_i32_0 = arith.constant 0 : i32
    %c0_i32_1 = arith.constant 0 : i32
    return %c0_i32, %c0_i32_0 : i32, i32
  }
  func.func @transform_10(%arg0: i32) -> (i32, i32) {
    %c0_i32 = arith.constant 0 : i32
    %c0_i32_0 = arith.constant 0 : i32
    %c0_i32_1 = arith.constant 0 : i32
    return %c0_i32, %c0_i32_0 : i32, i32
  }
  func.func @transform_11(%arg0: i32) -> (i32, i32) {
    %c0_i32 = arith.constant 0 : i32
    %c0_i32_0 = arith.constant 0 : i32
    return %c0_i32, %arg0 : i32, i32
  }
}

</mosaic_0001>

<llo_original>
// kernel: tpu_custom_call.1
$region0: #{tpu_custom_call.1}
  #allocation0 [shape = 'u32[]', space=smem, size = 0x4, offset = 0x4, fixed_abs, tag = 'smem constant byte address 0x4 - core index']
  #allocation1 [shape = 'u32[72,128]{1,0:T(1,128)}', space=vmem, size = 0x9000, scoped, tag = 'internal scratch']
  #allocation2 [shape = 'f32[1,1]{1,0:T(1,128)S(1)}', space=vmem, size = 0x200, scoped, tag = 'scoped memory for tpu_custom_call.1']
  %s0 = inlined_call_operand.vmem [shape: f32[1,256], index: 0, kind: input, shape index: {}]
  %s1 = inlined_call_operand.vmem [shape: f32[20,1], index: 1, kind: input, shape index: {}]
  %s2 = inlined_call_operand.vmem [shape: f32[20,1], index: 2, kind: input, shape index: {}]
  %s3 = inlined_call_operand.vmem [shape: f32[64,20], index: 3, kind: input, shape index: {}]
  %s4 = inlined_call_operand.vmem [shape: f32[64,1], index: 4, kind: input, shape index: {}]
  %s5 = inlined_call_operand.vmem [shape: f32[256,64], index: 5, kind: input, shape index: {}]
  %s6 = inlined_call_operand.vmem [shape: f32[256,1], index: 6, kind: input, shape index: {}]
  %s7 = inlined_call_operand.vmem [shape: f32[64,256], index: 7, kind: input, shape index: {}]
  %s8 = inlined_call_operand.vmem [shape: f32[64,1], index: 8, kind: input, shape index: {}]
  %s9 = inlined_call_operand.vmem [shape: f32[64,1], index: 9, kind: input, shape index: {}]
  %s10 = inlined_call_operand.<no memory space> [shape: f32[1,1], index: 10, kind: input, shape index: {}]
  %s11 = inlined_call_operand.hbm [shape: f32[1,256], index: 11, kind: output, shape index: {}]
  %s12 = sld [smem:[#allocation0]]
  $region54: #{tpu_custom_call.1} parent=0
    _
  %s14 = ssub.s32 1, %s12
  %s15 = scalar_select 0, %s14, %s12
  %v16 = vstv %s10
  %17 = vst [vmem:[#allocation2] sm:$0x1] %v16
  $region1: #{tpu_custom_call.1} parent=0
    #allocation3 [shape = 'u8[1024]{0}', space=vmem, size = 0x400, scoped, tag = 'output window, operand 0, single buffered']
    #allocation4 [shape = 's32[1]{0}', space=sflag, size = 0x4, scoped, tag = 'scoped memory for tpu_custom_call.1']
    %18 = vsyncpa [#allocation4], 0
    // Predicated region
    $region2: #{tpu_custom_call.1} parent=1 // pred_check
      _
    $region3: #{tpu_custom_call.1} parent=1 // pred_check_branch
      %20 = sbr.rel (0) target = $region5
    $region4: #{tpu_custom_call.1} parent=1 // pred_region
      _
    $region5: #{tpu_custom_call.1} parent=1 // pred_fallthru
      _
    // Predicated region
    $region6: #{tpu_custom_call.1} parent=1 // pred_check
      _
    $region7: #{tpu_custom_call.1} parent=1 // pred_check_branch
      %22 = sbr.rel (0) target = $region9
    $region8: #{tpu_custom_call.1} parent=1 // pred_region
      _
    $region9: #{tpu_custom_call.1} parent=1 // pred_fallthru
      _
    // Predicated region
    $region10: #{tpu_custom_call.1} parent=1 // pred_check
      _
    $region11: #{tpu_custom_call.1} parent=1 // pred_check_branch
      %24 = sbr.rel (0) target = $region13
    $region12: #{tpu_custom_call.1} parent=1 // pred_region
      _
    $region13: #{tpu_custom_call.1} parent=1 // pred_fallthru
      _
    // Predicated region
    $region14: #{tpu_custom_call.1} parent=1 // pred_check
      _
    $region15: #{tpu_custom_call.1} parent=1 // pred_check_branch
      %26 = sbr.rel (0) target = $region17
    $region16: #{tpu_custom_call.1} parent=1 // pred_region
      _
    $region17: #{tpu_custom_call.1} parent=1 // pred_fallthru
      _
    // Predicated region
    $region18: #{tpu_custom_call.1} parent=1 // pred_check
      _
    $region19: #{tpu_custom_call.1} parent=1 // pred_check_branch
      %28 = sbr.rel (0) target = $region21
    $region20: #{tpu_custom_call.1} parent=1 // pred_region
      _
    $region21: #{tpu_custom_call.1} parent=1 // pred_fallthru
      _
    // Predicated region
    $region22: #{tpu_custom_call.1} parent=1 // pred_check
      _
    $region23: #{tpu_custom_call.1} parent=1 // pred_check_branch
      %30 = sbr.rel (0) target = $region25
    $region24: #{tpu_custom_call.1} parent=1 // pred_region
      _
    $region25: #{tpu_custom_call.1} parent=1 // pred_fallthru
      _
    // Predicated region
    $region26: #{tpu_custom_call.1} parent=1 // pred_check
      _
    $region27: #{tpu_custom_call.1} parent=1 // pred_check_branch
      %32 = sbr.rel (0) target = $region29
    $region28: #{tpu_custom_call.1} parent=1 // pred_region
      _
    $region29: #{tpu_custom_call.1} parent=1 // pred_fallthru
      _
    // Predicated region
    $region30: #{tpu_custom_call.1} parent=1 // pred_check
      _
    $region31: #{tpu_custom_call.1} parent=1 // pred_check_branch
      %34 = sbr.rel (0) target = $region33
    $region32: #{tpu_custom_call.1} parent=1 // pred_region
      _
    $region33: #{tpu_custom_call.1} parent=1 // pred_fallthru
      _
    // Predicated region
    $region34: #{tpu_custom_call.1} parent=1 // pred_check
      _
    $region35: #{tpu_custom_call.1} parent=1 // pred_check_branch
      %36 = sbr.rel (0) target = $region37
    $region36: #{tpu_custom_call.1} parent=1 // pred_region
      _
    $region37: #{tpu_custom_call.1} parent=1 // pred_fallthru
      _
    // Predicated region
    $region38: #{tpu_custom_call.1} parent=1 // pred_check
      _
    $region39: #{tpu_custom_call.1} parent=1 // pred_check_branch
      %38 = sbr.rel (0) target = $region41
    $region40: #{tpu_custom_call.1} parent=1 // pred_region
      _
    $region41: #{tpu_custom_call.1} parent=1 // pred_fallthru
      _
    // Predicated region
    $region42: #{tpu_custom_call.1} parent=1 // pred_check
      _
    $region43: #{tpu_custom_call.1} parent=1 // pred_check_branch
      %40 = sbr.rel (0) target = $region45
    $region44: #{tpu_custom_call.1} parent=1 // pred_region
      _
    $region45: #{tpu_custom_call.1} parent=1 // pred_fallthru
      _
    %v41 = vld [vmem:[%s0] sm:$0x3]
    %v42 = vld [vmem:[%s1] sm:$0xff]
    %v43 = vld [vmem:[%s1 + $0x8] sm:$0xff]
    %v44 = vld [vmem:[%s1 + $0x10] sm:$0xf]
    %46 = vset.pattern.permute.xlu0 0
    %47 = vperm.xlu0 %46, %v42
    %v48 = vpop.permute.xlu0 %47
    %51 = vset.pattern.permute.xlu0 0
    %52 = vperm.xlu0 %51, %v43
    %v53 = vpop.permute.xlu0 %52
    %56 = vset.pattern.permute.xlu0 0
    %57 = vperm.xlu0 %56, %v44
    %v58 = vpop.permute.xlu0 %57
    %v61 = vperm.slane %v41, 0
    %v62 = vperm.slane %v41, 1
    %v65 = vmul.f32 %v48, %v61
    %v66 = vmul.f32 %v48, %v62
    %v67 = vmul.f32 %v53, %v61
    %v68 = vmul.f32 %v53, %v62
    %v69 = vmul.f32 %v58, %v61
    %v70 = vmul.f32 %v58, %v62
    %v71 = vld [vmem:[%s2] sm:$0xff]
    %v72 = vld [vmem:[%s2 + $0x8] sm:$0xff]
    %v73 = vld [vmem:[%s2 + $0x10] sm:$0xf]
    %75 = vset.pattern.permute.xlu0 0
    %76 = vperm.xlu0 %75, %v71
    %v77 = vpop.permute.xlu0 %76
    %80 = vset.pattern.permute.xlu0 0
    %81 = vperm.xlu0 %80, %v72
    %v82 = vpop.permute.xlu0 %81
    %85 = vset.pattern.permute.xlu0 0
    %86 = vperm.xlu0 %85, %v73
    %v87 = vpop.permute.xlu0 %86
    %v89 = vadd.f32 %v65, %v77
    %v90 = vadd.f32 %v66, %v77
    %v91 = vadd.f32 %v67, %v82
    %v92 = vadd.f32 %v68, %v82
    %v93 = vadd.f32 %v69, %v87
    %v94 = vadd.f32 %v70, %v87
    %v95 = vxor.u32 %v89, 2147483648
    %v96 = vxor.u32 %v90, 2147483648
    %v97 = vxor.u32 %v91, 2147483648
    %v98 = vxor.u32 %v92, 2147483648
    %v99 = vxor.u32 %v93, 2147483648
    %v100 = vxor.u32 %v94, 2147483648
    %v101 = vmul.f32 %v95, 1.442695
    %v102 = vpow.pop %v101
    %v103 = vmul.f32 %v96, 1.442695
    %v104 = vpow.pop %v103
    %v105 = vmul.f32 %v97, 1.442695
    %v106 = vpow.pop %v105
    %v107 = vmul.f32 %v98, 1.442695
    %v108 = vpow.pop %v107
    %v109 = vmul.f32 %v99, 1.442695
    %v110 = vpow.pop %v109
    %v111 = vmul.f32 %v100, 1.442695
    %v112 = vpow.pop %v111
    %v113 = vadd.f32 %v102, 1.0
    %v114 = vadd.f32 %v104, 1.0
    %v115 = vadd.f32 %v106, 1.0
    %v116 = vadd.f32 %v108, 1.0
    %v117 = vadd.f32 %v110, 1.0
    %v118 = vadd.f32 %v112, 1.0
    %v119 = vrcp.pop %v113
    %v120 = vmul.f32 %v113, %v119
    %v121 = vsub.f32 1.0, %v120
    %v122 = vmul.f32 %v119, %v121
    %v123 = vadd.f32 %v119, %v122
    %vm124 = vweird.f32 %v113
    %vm125 = vweird.f32 %v119
    %vm126 = vmor %vm124, %vm125
    %v127 = vsel %vm126, %v119, %v123
    %v128 = vand.u32 2147483647, %v113
    %vm129 = vcmp.eq.f32.partialorder %v128, 8.507059e+37
    %v130 = vand.u32 %v113, 2147483648
    %v131 = vor.u32 1.1754944e-38, %v130
    %v132 = vsel %vm129, %v131, %v127
    %v133 = vmul.f32 1.0, %v132
    %v134 = vrcp.pop %v114
    %v135 = vmul.f32 %v114, %v134
    %v136 = vsub.f32 1.0, %v135
    %v137 = vmul.f32 %v134, %v136
    %v138 = vadd.f32 %v134, %v137
    %vm139 = vweird.f32 %v114
    %vm140 = vweird.f32 %v134
    %vm141 = vmor %vm139, %vm140
    %v142 = vsel %vm141, %v134, %v138
    %v143 = vand.u32 2147483647, %v114
    %vm144 = vcmp.eq.f32.partialorder %v143, 8.507059e+37
    %v145 = vand.u32 %v114, 2147483648
    %v146 = vor.u32 1.1754944e-38, %v145
    %v147 = vsel %vm144, %v146, %v142
    %v148 = vmul.f32 1.0, %v147
    %v149 = vrcp.pop %v115
    %v150 = vmul.f32 %v115, %v149
    %v151 = vsub.f32 1.0, %v150
    %v152 = vmul.f32 %v149, %v151
    %v153 = vadd.f32 %v149, %v152
    %vm154 = vweird.f32 %v115
    %vm155 = vweird.f32 %v149
    %vm156 = vmor %vm154, %vm155
    %v157 = vsel %vm156, %v149, %v153
    %v158 = vand.u32 2147483647, %v115
    %vm159 = vcmp.eq.f32.partialorder %v158, 8.507059e+37
    %v160 = vand.u32 %v115, 2147483648
    %v161 = vor.u32 1.1754944e-38, %v160
    %v162 = vsel %vm159, %v161, %v157
    %v163 = vmul.f32 1.0, %v162
    %v164 = vrcp.pop %v116
    %v165 = vmul.f32 %v116, %v164
    %v166 = vsub.f32 1.0, %v165
    %v167 = vmul.f32 %v164, %v166
    %v168 = vadd.f32 %v164, %v167
    %vm169 = vweird.f32 %v116
    %vm170 = vweird.f32 %v164
    %vm171 = vmor %vm169, %vm170
    %v172 = vsel %vm171, %v164, %v168
    %v173 = vand.u32 2147483647, %v116
    %vm174 = vcmp.eq.f32.partialorder %v173, 8.507059e+37
    %v175 = vand.u32 %v116, 2147483648
    %v176 = vor.u32 1.1754944e-38, %v175
    %v177 = vsel %vm174, %v176, %v172
    %v178 = vmul.f32 1.0, %v177
    %v179 = vrcp.pop %v117
    %v180 = vmul.f32 %v117, %v179
    %v181 = vsub.f32 1.0, %v180
    %v182 = vmul.f32 %v179, %v181
    %v183 = vadd.f32 %v179, %v182
    %vm184 = vweird.f32 %v117
    %vm185 = vweird.f32 %v179
    %vm186 = vmor %vm184, %vm185
    %v187 = vsel %vm186, %v179, %v183
    %v188 = vand.u32 2147483647, %v117
    %vm189 = vcmp.eq.f32.partialorder %v188, 8.507059e+37
    %v190 = vand.u32 %v117, 2147483648
    %v191 = vor.u32 1.1754944e-38, %v190
    %v192 = vsel %vm189, %v191, %v187
    %v193 = vmul.f32 1.0, %v192
    %v194 = vrcp.pop %v118
    %v195 = vmul.f32 %v118, %v194
    %v196 = vsub.f32 1.0, %v195
    %v197 = vmul.f32 %v194, %v196
    %v198 = vadd.f32 %v194, %v197
    %vm199 = vweird.f32 %v118
    %vm200 = vweird.f32 %v194
    %vm201 = vmor %vm199, %vm200
    %v202 = vsel %vm201, %v194, %v198
    %v203 = vand.u32 2147483647, %v118
    %vm204 = vcmp.eq.f32.partialorder %v203, 8.507059e+37
    %v205 = vand.u32 %v118, 2147483648
    %v206 = vor.u32 1.1754944e-38, %v205
    %v207 = vsel %vm204, %v206, %v202
    %v208 = vmul.f32 1.0, %v207
    %v209 = vld [vmem:[%s3] sm:$0xff]
    %v210 = vld [vmem:[%s3 + $0x8] sm:$0xff]
    %v211 = vld [vmem:[%s3 + $0x10] sm:$0xff]
    %v212 = vld [vmem:[%s3 + $0x18] sm:$0xff]
    %v213 = vld [vmem:[%s3 + $0x20] sm:$0xff]
    %v214 = vld [vmem:[%s3 + $0x28] sm:$0xff]
    %v215 = vld [vmem:[%s3 + $0x30] sm:$0xff]
    %v216 = vld [vmem:[%s3 + $0x38] sm:$0xff]
    %v217 = vld [vmem:[%s4] sm:$0xff]
    %v218 = vld [vmem:[%s4 + $0x8] sm:$0xff]
    %v219 = vld [vmem:[%s4 + $0x10] sm:$0xff]
    %v220 = vld [vmem:[%s4 + $0x18] sm:$0xff]
    %v221 = vld [vmem:[%s4 + $0x20] sm:$0xff]
    %v222 = vld [vmem:[%s4 + $0x28] sm:$0xff]
    %v223 = vld [vmem:[%s4 + $0x30] sm:$0xff]
    %v224 = vld [vmem:[%s4 + $0x38] sm:$0xff]
    %226 = vset.pattern.permute.xlu0 0
    %227 = vperm.xlu0 %226, %v217
    %v228 = vpop.permute.xlu0 %227
    %231 = vset.pattern.permute.xlu0 0
    %232 = vperm.xlu0 %231, %v218
    %v233 = vpop.permute.xlu0 %232
    %236 = vset.pattern.permute.xlu0 0
    %237 = vperm.xlu0 %236, %v219
    %v238 = vpop.permute.xlu0 %237
    %241 = vset.pattern.permute.xlu0 0
    %242 = vperm.xlu0 %241, %v220
    %v243 = vpop.permute.xlu0 %242
    %246 = vset.pattern.permute.xlu0 0
    %247 = vperm.xlu0 %246, %v221
    %v248 = vpop.permute.xlu0 %247
    %251 = vset.pattern.permute.xlu0 0
    %252 = vperm.xlu0 %251, %v222
    %v253 = vpop.permute.xlu0 %252
    %256 = vset.pattern.permute.xlu0 0
    %257 = vperm.xlu0 %256, %v223
    %v258 = vpop.permute.xlu0 %257
    %261 = vset.pattern.permute.xlu0 0
    %262 = vperm.xlu0 %261, %v224
    %v263 = vpop.permute.xlu0 %262
    %vm265 = vcmask 162816
    %v267 = vsel %vm265, %v209, 0
    %v270 = vsel %vm265, %v210, 0
    %v273 = vsel %vm265, %v211, 0
    %v276 = vsel %vm265, %v212, 0
    %v279 = vsel %vm265, %v213, 0
    %v282 = vsel %vm265, %v214, 0
    %v285 = vsel %vm265, %v215, 0
    %v288 = vsel %vm265, %v216, 0
    %vm290 = vcmask 1043456
    %v292 = vsel %vm290, %v193, 0
    %v295 = vsel %vm290, %v208, 0
    %297 = vmatpush.msra.mxu0 0.0
    %298 = vmatpush.msra.mxu0 0.0
    %299 = vmatpush.msra.mxu0 0.0
    %300 = vmatpush.msra.mxu0 0.0
    %301 = vmatpush.msra.mxu0 0.0
    %302 = vmatpush.msra.mxu0 0.0
    %303 = vmatpush.msra.mxu0 0.0
    %304 = vmatpush.msra.mxu0 0.0
    %305 = vmatpush.msra.mxu0 0.0
    %306 = vmatpush.msra.mxu0 0.0
    %307 = vmatpush.msra.mxu0 0.0
    %308 = vmatpush.msra.mxu0 0.0
    %309 = vmatpush.msra.mxu0 0.0
    %310 = vmatpush.msra.mxu0 %v292
    %311 = vmatpush.msra.mxu0 %v163
    %312 = vmatpush.msra.mxu0 %v133
    %313 = vmatmul.f32.gmra.mxu0 %v267
    %v314 = vpop.f32.mrf.mxu0
    %v315 = vadd.f32 %v228, %v314
    %316 = vmatmul.f32.gmra.mxu0 %v270
    %v317 = vpop.f32.mrf.mxu0
    %v318 = vadd.f32 %v233, %v317
    %319 = vmatmul.f32.gmra.mxu0 %v273
    %v320 = vpop.f32.mrf.mxu0
    %v321 = vadd.f32 %v238, %v320
    %322 = vmatmul.f32.gmra.mxu0 %v276
    %v323 = vpop.f32.mrf.mxu0
    %v324 = vadd.f32 %v243, %v323
    %325 = vmatmul.f32.gmra.mxu0 %v279
    %v326 = vpop.f32.mrf.mxu0
    %v327 = vadd.f32 %v248, %v326
    %328 = vmatmul.f32.gmra.mxu0 %v282
    %v329 = vpop.f32.mrf.mxu0
    %v330 = vadd.f32 %v253, %v329
    %331 = vmatmul.f32.gmra.mxu0 %v285
    %v332 = vpop.f32.mrf.mxu0
    %v333 = vadd.f32 %v258, %v332
    %334 = vmatmul.f32.gmra.mxu0 %v288
    %v335 = vpop.f32.mrf.mxu0
    %v336 = vadd.f32 %v263, %v335
    %337 = vdwg.mxu0
    %338 = vmatpush.msra.mxu0 0.0
    %339 = vmatpush.msra.mxu0 0.0
    %340 = vmatpush.msra.mxu0 0.0
    %341 = vmatpush.msra.mxu0 0.0
    %342 = vmatpush.msra.mxu0 0.0
    %343 = vmatpush.msra.mxu0 0.0
    %344 = vmatpush.msra.mxu0 0.0
    %345 = vmatpush.msra.mxu0 0.0
    %346 = vmatpush.msra.mxu0 0.0
    %347 = vmatpush.msra.mxu0 0.0
    %348 = vmatpush.msra.mxu0 0.0
    %349 = vmatpush.msra.mxu0 0.0
    %350 = vmatpush.msra.mxu0 0.0
    %351 = vmatpush.msra.mxu0 %v295
    %352 = vmatpush.msra.mxu0 %v178
    %353 = vmatpush.msra.mxu0 %v148
    %354 = vmatmul.f32.gmra.mxu0 %v267
    %v355 = vpop.f32.mrf.mxu0
    %v356 = vadd.f32 %v228, %v355
    %357 = vmatmul.f32.gmra.mxu0 %v270
    %v358 = vpop.f32.mrf.mxu0
    %v359 = vadd.f32 %v233, %v358
    %360 = vmatmul.f32.gmra.mxu0 %v273
    %v361 = vpop.f32.mrf.mxu0
    %v362 = vadd.f32 %v238, %v361
    %363 = vmatmul.f32.gmra.mxu0 %v276
    %v364 = vpop.f32.mrf.mxu0
    %v365 = vadd.f32 %v243, %v364
    %366 = vmatmul.f32.gmra.mxu0 %v279
    %v367 = vpop.f32.mrf.mxu0
    %v368 = vadd.f32 %v248, %v367
    %369 = vmatmul.f32.gmra.mxu0 %v282
    %v370 = vpop.f32.mrf.mxu0
    %v371 = vadd.f32 %v253, %v370
    %372 = vmatmul.f32.gmra.mxu0 %v285
    %v373 = vpop.f32.mrf.mxu0
    %v374 = vadd.f32 %v258, %v373
    %375 = vmatmul.f32.gmra.mxu0 %v288
    %v376 = vpop.f32.mrf.mxu0
    %v377 = vadd.f32 %v263, %v376
    %378 = vdwg.mxu0
    %v379 = vmax.f32 %v315, 0.0
    %v380 = vmax.f32 %v356, 0.0
    %v381 = vmax.f32 %v318, 0.0
    %v382 = vmax.f32 %v359, 0.0
    %v383 = vmax.f32 %v321, 0.0
    %v384 = vmax.f32 %v362, 0.0
    %v385 = vmax.f32 %v324, 0.0
    %v386 = vmax.f32 %v365, 0.0
    %v387 = vmax.f32 %v327, 0.0
    %v388 = vmax.f32 %v368, 0.0
    %v389 = vmax.f32 %v330, 0.0
    %v390 = vmax.f32 %v371, 0.0
    %v391 = vmax.f32 %v333, 0.0
    %v392 = vmax.f32 %v374, 0.0
    %v393 = vmax.f32 %v336, 0.0
    %v394 = vmax.f32 %v377, 0.0
    %v395 = vld [vmem:[%s5] sm:$0xff]
    %v396 = vld [vmem:[%s5 + $0x8] sm:$0xff]
    %v397 = vld [vmem:[%s5 + $0x10] sm:$0xff]
    %v398 = vld [vmem:[%s5 + $0x18] sm:$0xff]
    %v399 = vld [vmem:[%s5 + $0x20] sm:$0xff]
    %v400 = vld [vmem:[%s5 + $0x28] sm:$0xff]
    %v401 = vld [vmem:[%s5 + $0x30] sm:$0xff]
    %v402 = vld [vmem:[%s5 + $0x38] sm:$0xff]
    %v403 = vld [vmem:[%s5 + $0x40] sm:$0xff]
    %v404 = vld [vmem:[%s5 + $0x48] sm:$0xff]
    %v405 = vld [vmem:[%s5 + $0x50] sm:$0xff]
    %v406 = vld [vmem:[%s5 + $0x58] sm:$0xff]
    %v407 = vld [vmem:[%s5 + $0x60] sm:$0xff]
    %v408 = vld [vmem:[%s5 + $0x68] sm:$0xff]
    %v409 = vld [vmem:[%s5 + $0x70] sm:$0xff]
    %v410 = vld [vmem:[%s5 + $0x78] sm:$0xff]
    %v411 = vld [vmem:[%s5 + $0x80] sm:$0xff]
    %v412 = vld [vmem:[%s5 + $0x88] sm:$0xff]
    %v413 = vld [vmem:[%s5 + $0x90] sm:$0xff]
    %v414 = vld [vmem:[%s5 + $0x98] sm:$0xff]
    %v415 = vld [vmem:[%s5 + $0xa0] sm:$0xff]
    %v416 = vld [vmem:[%s5 + $0xa8] sm:$0xff]
    %v417 = vld [vmem:[%s5 + $0xb0] sm:$0xff]
    %v418 = vld [vmem:[%s5 + $0xb8] sm:$0xff]
    %v419 = vld [vmem:[%s5 + $0xc0] sm:$0xff]
    %v420 = vld [vmem:[%s5 + $0xc8] sm:$0xff]
    %v421 = vld [vmem:[%s5 + $0xd0] sm:$0xff]
    %v422 = vld [vmem:[%s5 + $0xd8] sm:$0xff]
    %v423 = vld [vmem:[%s5 + $0xe0] sm:$0xff]
    %v424 = vld [vmem:[%s5 + $0xe8] sm:$0xff]
    %v425 = vld [vmem:[%s5 + $0xf0] sm:$0xff]
    %v426 = vld [vmem:[%s5 + $0xf8] sm:$0xff]
    %v427 = vld [vmem:[%s6] sm:$0xff]
    %v428 = vld [vmem:[%s6 + $0x8] sm:$0xff]
    %v429 = vld [vmem:[%s6 + $0x10] sm:$0xff]
    %v430 = vld [vmem:[%s6 + $0x18] sm:$0xff]
    %v431 = vld [vmem:[%s6 + $0x20] sm:$0xff]
    %v432 = vld [vmem:[%s6 + $0x28] sm:$0xff]
    %v433 = vld [vmem:[%s6 + $0x30] sm:$0xff]
    %v434 = vld [vmem:[%s6 + $0x38] sm:$0xff]
    %v435 = vld [vmem:[%s6 + $0x40] sm:$0xff]
    %v436 = vld [vmem:[%s6 + $0x48] sm:$0xff]
    %v437 = vld [vmem:[%s6 + $0x50] sm:$0xff]
    %v438 = vld [vmem:[%s6 + $0x58] sm:$0xff]
    %v439 = vld [vmem:[%s6 + $0x60] sm:$0xff]
    %v440 = vld [vmem:[%s6 + $0x68] sm:$0xff]
    %v441 = vld [vmem:[%s6 + $0x70] sm:$0xff]
    %v442 = vld [vmem:[%s6 + $0x78] sm:$0xff]
    %v443 = vld [vmem:[%s6 + $0x80] sm:$0xff]
    %v444 = vld [vmem:[%s6 + $0x88] sm:$0xff]
    %v445 = vld [vmem:[%s6 + $0x90] sm:$0xff]
    %v446 = vld [vmem:[%s6 + $0x98] sm:$0xff]
    %v447 = vld [vmem:[%s6 + $0xa0] sm:$0xff]
    %v448 = vld [vmem:[%s6 + $0xa8] sm:$0xff]
    %v449 = vld [vmem:[%s6 + $0xb0] sm:$0xff]
    %v450 = vld [vmem:[%s6 + $0xb8] sm:$0xff]
    %v451 = vld [vmem:[%s6 + $0xc0] sm:$0xff]
    %v452 = vld [vmem:[%s6 + $0xc8] sm:$0xff]
    %v453 = vld [vmem:[%s6 + $0xd0] sm:$0xff]
    %v454 = vld [vmem:[%s6 + $0xd8] sm:$0xff]
    %v455 = vld [vmem:[%s6 + $0xe0] sm:$0xff]
    %v456 = vld [vmem:[%s6 + $0xe8] sm:$0xff]
    %v457 = vld [vmem:[%s6 + $0xf0] sm:$0xff]
    %v458 = vld [vmem:[%s6 + $0xf8] sm:$0xff]
    %460 = vset.pattern.permute.xlu0 0
    %461 = vperm.xlu0 %460, %v427
    %v462 = vpop.permute.xlu0 %461
    %465 = vset.pattern.permute.xlu0 0
    %466 = vperm.xlu0 %465, %v428
    %v467 = vpop.permute.xlu0 %466
    %470 = vset.pattern.permute.xlu0 0
    %471 = vperm.xlu0 %470, %v429
    %v472 = vpop.permute.xlu0 %471
    %475 = vset.pattern.permute.xlu0 0
    %476 = vperm.xlu0 %475, %v430
    %v477 = vpop.permute.xlu0 %476
    %480 = vset.pattern.permute.xlu0 0
    %481 = vperm.xlu0 %480, %v431
    %v482 = vpop.permute.xlu0 %481
    %485 = vset.pattern.permute.xlu0 0
    %486 = vperm.xlu0 %485, %v432
    %v487 = vpop.permute.xlu0 %486
    %490 = vset.pattern.permute.xlu0 0
    %491 = vperm.xlu0 %490, %v433
    %v492 = vpop.permute.xlu0 %491
    %495 = vset.pattern.permute.xlu0 0
    %496 = vperm.xlu0 %495, %v434
    %v497 = vpop.permute.xlu0 %496
    %500 = vset.pattern.permute.xlu0 0
    %501 = vperm.xlu0 %500, %v435
    %v502 = vpop.permute.xlu0 %501
    %505 = vset.pattern.permute.xlu0 0
    %506 = vperm.xlu0 %505, %v436
    %v507 = vpop.permute.xlu0 %506
    %510 = vset.pattern.permute.xlu0 0
    %511 = vperm.xlu0 %510, %v437
    %v512 = vpop.permute.xlu0 %511
    %515 = vset.pattern.permute.xlu0 0
    %516 = vperm.xlu0 %515, %v438
    %v517 = vpop.permute.xlu0 %516
    %520 = vset.pattern.permute.xlu0 0
    %521 = vperm.xlu0 %520, %v439
    %v522 = vpop.permute.xlu0 %521
    %525 = vset.pattern.permute.xlu0 0
    %526 = vperm.xlu0 %525, %v440
    %v527 = vpop.permute.xlu0 %526
    %530 = vset.pattern.permute.xlu0 0
    %531 = vperm.xlu0 %530, %v441
    %v532 = vpop.permute.xlu0 %531
    %535 = vset.pattern.permute.xlu0 0
    %536 = vperm.xlu0 %535, %v442
    %v537 = vpop.permute.xlu0 %536
    %540 = vset.pattern.permute.xlu0 0
    %541 = vperm.xlu0 %540, %v443
    %v542 = vpop.permute.xlu0 %541
    %545 = vset.pattern.permute.xlu0 0
    %546 = vperm.xlu0 %545, %v444
    %v547 = vpop.permute.xlu0 %546
    %550 = vset.pattern.permute.xlu0 0
    %551 = vperm.xlu0 %550, %v445
    %v552 = vpop.permute.xlu0 %551
    %555 = vset.pattern.permute.xlu0 0
    %556 = vperm.xlu0 %555, %v446
    %v557 = vpop.permute.xlu0 %556
    %560 = vset.pattern.permute.xlu0 0
    %561 = vperm.xlu0 %560, %v447
    %v562 = vpop.permute.xlu0 %561
    %565 = vset.pattern.permute.xlu0 0
    %566 = vperm.xlu0 %565, %v448
    %v567 = vpop.permute.xlu0 %566
    %570 = vset.pattern.permute.xlu0 0
    %571 = vperm.xlu0 %570, %v449
    %v572 = vpop.permute.xlu0 %571
    %575 = vset.pattern.permute.xlu0 0
    %576 = vperm.xlu0 %575, %v450
    %v577 = vpop.permute.xlu0 %576
    %580 = vset.pattern.permute.xlu0 0
    %581 = vperm.xlu0 %580, %v451
    %v582 = vpop.permute.xlu0 %581
    %585 = vset.pattern.permute.xlu0 0
    %586 = vperm.xlu0 %585, %v452
    %v587 = vpop.permute.xlu0 %586
    %590 = vset.pattern.permute.xlu0 0
    %591 = vperm.xlu0 %590, %v453
    %v592 = vpop.permute.xlu0 %591
    %595 = vset.pattern.permute.xlu0 0
    %596 = vperm.xlu0 %595, %v454
    %v597 = vpop.permute.xlu0 %596
    %600 = vset.pattern.permute.xlu0 0
    %601 = vperm.xlu0 %600, %v455
    %v602 = vpop.permute.xlu0 %601
    %605 = vset.pattern.permute.xlu0 0
    %606 = vperm.xlu0 %605, %v456
    %v607 = vpop.permute.xlu0 %606
    %610 = vset.pattern.permute.xlu0 0
    %611 = vperm.xlu0 %610, %v457
    %v612 = vpop.permute.xlu0 %611
    %615 = vset.pattern.permute.xlu0 0
    %616 = vperm.xlu0 %615, %v458
    %v617 = vpop.permute.xlu0 %616
    %vm619 = vcmask 523264
    %v621 = vsel %vm619, %v395, 0
    %v624 = vsel %vm619, %v396, 0
    %v627 = vsel %vm619, %v397, 0
    %v630 = vsel %vm619, %v398, 0
    %v633 = vsel %vm619, %v399, 0
    %v636 = vsel %vm619, %v400, 0
    %v639 = vsel %vm619, %v401, 0
    %v642 = vsel %vm619, %v402, 0
    %v645 = vsel %vm619, %v403, 0
    %v648 = vsel %vm619, %v404, 0
    %v651 = vsel %vm619, %v405, 0
    %v654 = vsel %vm619, %v406, 0
    %v657 = vsel %vm619, %v407, 0
    %v660 = vsel %vm619, %v408, 0
    %v663 = vsel %vm619, %v409, 0
    %v666 = vsel %vm619, %v410, 0
    %v669 = vsel %vm619, %v411, 0
    %v672 = vsel %vm619, %v412, 0
    %v675 = vsel %vm619, %v413, 0
    %v678 = vsel %vm619, %v414, 0
    %v681 = vsel %vm619, %v415, 0
    %v684 = vsel %vm619, %v416, 0
    %v687 = vsel %vm619, %v417, 0
    %v690 = vsel %vm619, %v418, 0
    %v693 = vsel %vm619, %v419, 0
    %v696 = vsel %vm619, %v420, 0
    %v699 = vsel %vm619, %v421, 0
    %v702 = vsel %vm619, %v422, 0
    %v705 = vsel %vm619, %v423, 0
    %v708 = vsel %vm619, %v424, 0
    %v711 = vsel %vm619, %v425, 0
    %v714 = vsel %vm619, %v426, 0
    %716 = vmatpush.msra.mxu0 0.0
    %717 = vmatpush.msra.mxu0 0.0
    %718 = vmatpush.msra.mxu0 0.0
    %719 = vmatpush.msra.mxu0 0.0
    %720 = vmatpush.msra.mxu0 0.0
    %721 = vmatpush.msra.mxu0 0.0
    %722 = vmatpush.msra.mxu0 0.0
    %723 = vmatpush.msra.mxu0 0.0
    %724 = vmatpush.msra.mxu0 %v393
    %725 = vmatpush.msra.mxu0 %v391
    %726 = vmatpush.msra.mxu0 %v389
    %727 = vmatpush.msra.mxu0 %v387
    %728 = vmatpush.msra.mxu0 %v385
    %729 = vmatpush.msra.mxu0 %v383
    %730 = vmatpush.msra.mxu0 %v381
    %731 = vmatpush.msra.mxu0 %v379
    %732 = vmatmul.f32.gmra.mxu0 %v621
    %v733 = vpop.f32.mrf.mxu0
    %v734 = vadd.f32 %v462, %v733
    %735 = vmatmul.f32.gmra.mxu0 %v624
    %v736 = vpop.f32.mrf.mxu0
    %v737 = vadd.f32 %v467, %v736
    %738 = vmatmul.f32.gmra.mxu0 %v627
    %v739 = vpop.f32.mrf.mxu0
    %v740 = vadd.f32 %v472, %v739
    %741 = vmatmul.f32.gmra.mxu0 %v630
    %v742 = vpop.f32.mrf.mxu0
    %v743 = vadd.f32 %v477, %v742
    %744 = vmatmul.f32.gmra.mxu0 %v633
    %v745 = vpop.f32.mrf.mxu0
    %v746 = vadd.f32 %v482, %v745
    %747 = vmatmul.f32.gmra.mxu0 %v636
    %v748 = vpop.f32.mrf.mxu0
    %v749 = vadd.f32 %v487, %v748
    %750 = vmatmul.f32.gmra.mxu0 %v639
    %v751 = vpop.f32.mrf.mxu0
    %v752 = vadd.f32 %v492, %v751
    %753 = vmatmul.f32.gmra.mxu0 %v642
    %v754 = vpop.f32.mrf.mxu0
    %v755 = vadd.f32 %v497, %v754
    %756 = vmatmul.f32.gmra.mxu0 %v645
    %v757 = vpop.f32.mrf.mxu0
    %v758 = vadd.f32 %v502, %v757
    %759 = vmatmul.f32.gmra.mxu0 %v648
    %v760 = vpop.f32.mrf.mxu0
    %v761 = vadd.f32 %v507, %v760
    %762 = vmatmul.f32.gmra.mxu0 %v651
    %v763 = vpop.f32.mrf.mxu0
    %v764 = vadd.f32 %v512, %v763
    %765 = vmatmul.f32.gmra.mxu0 %v654
    %v766 = vpop.f32.mrf.mxu0
    %v767 = vadd.f32 %v517, %v766
    %768 = vmatmul.f32.gmra.mxu0 %v657
    %v769 = vpop.f32.mrf.mxu0
    %v770 = vadd.f32 %v522, %v769
    %771 = vmatmul.f32.gmra.mxu0 %v660
    %v772 = vpop.f32.mrf.mxu0
    %v773 = vadd.f32 %v527, %v772
    %774 = vmatmul.f32.gmra.mxu0 %v663
    %v775 = vpop.f32.mrf.mxu0
    %v776 = vadd.f32 %v532, %v775
    %777 = vmatmul.f32.gmra.mxu0 %v666
    %v778 = vpop.f32.mrf.mxu0
    %v779 = vadd.f32 %v537, %v778
    %780 = vmatmul.f32.gmra.mxu0 %v669
    %v781 = vpop.f32.mrf.mxu0
    %v782 = vadd.f32 %v542, %v781
    %783 = vmatmul.f32.gmra.mxu0 %v672
    %v784 = vpop.f32.mrf.mxu0
    %v785 = vadd.f32 %v547, %v784
    %786 = vmatmul.f32.gmra.mxu0 %v675
    %v787 = vpop.f32.mrf.mxu0
    %v788 = vadd.f32 %v552, %v787
    %789 = vmatmul.f32.gmra.mxu0 %v678
    %v790 = vpop.f32.mrf.mxu0
    %v791 = vadd.f32 %v557, %v790
    %792 = vmatmul.f32.gmra.mxu0 %v681
    %v793 = vpop.f32.mrf.mxu0
    %v794 = vadd.f32 %v562, %v793
    %795 = vmatmul.f32.gmra.mxu0 %v684
    %v796 = vpop.f32.mrf.mxu0
    %v797 = vadd.f32 %v567, %v796
    %798 = vmatmul.f32.gmra.mxu0 %v687
    %v799 = vpop.f32.mrf.mxu0
    %v800 = vadd.f32 %v572, %v799
    %801 = vmatmul.f32.gmra.mxu0 %v690
    %v802 = vpop.f32.mrf.mxu0
    %v803 = vadd.f32 %v577, %v802
    %804 = vmatmul.f32.gmra.mxu0 %v693
    %v805 = vpop.f32.mrf.mxu0
    %v806 = vadd.f32 %v582, %v805
    %807 = vmatmul.f32.gmra.mxu0 %v696
    %v808 = vpop.f32.mrf.mxu0
    %v809 = vadd.f32 %v587, %v808
    %810 = vmatmul.f32.gmra.mxu0 %v699
    %v811 = vpop.f32.mrf.mxu0
    %v812 = vadd.f32 %v592, %v811
    %813 = vmatmul.f32.gmra.mxu0 %v702
    %v814 = vpop.f32.mrf.mxu0
    %v815 = vadd.f32 %v597, %v814
    %816 = vmatmul.f32.gmra.mxu0 %v705
    %v817 = vpop.f32.mrf.mxu0
    %v818 = vadd.f32 %v602, %v817
    %819 = vmatmul.f32.gmra.mxu0 %v708
    %v820 = vpop.f32.mrf.mxu0
    %v821 = vadd.f32 %v607, %v820
    %822 = vmatmul.f32.gmra.mxu0 %v711
    %v823 = vpop.f32.mrf.mxu0
    %v824 = vadd.f32 %v612, %v823
    %825 = vmatmul.f32.gmra.mxu0 %v714
    %v826 = vpop.f32.mrf.mxu0
    %v827 = vadd.f32 %v617, %v826
    %828 = vdwg.mxu0
    %829 = vmatpush.msra.mxu0 0.0
    %830 = vmatpush.msra.mxu0 0.0
    %831 = vmatpush.msra.mxu0 0.0
    %832 = vmatpush.msra.mxu0 0.0
    %833 = vmatpush.msra.mxu0 0.0
    %834 = vmatpush.msra.mxu0 0.0
    %835 = vmatpush.msra.mxu0 0.0
    %836 = vmatpush.msra.mxu0 0.0
    %837 = vmatpush.msra.mxu0 %v394
    %838 = vmatpush.msra.mxu0 %v392
    %839 = vmatpush.msra.mxu0 %v390
    %840 = vmatpush.msra.mxu0 %v388
    %841 = vmatpush.msra.mxu0 %v386
    %842 = vmatpush.msra.mxu0 %v384
    %843 = vmatpush.msra.mxu0 %v382
    %844 = vmatpush.msra.mxu0 %v380
    %845 = vmatmul.f32.gmra.mxu0 %v621
    %v846 = vpop.f32.mrf.mxu0
    %v847 = vadd.f32 %v462, %v846
    %848 = vmatmul.f32.gmra.mxu0 %v624
    %v849 = vpop.f32.mrf.mxu0
    %v850 = vadd.f32 %v467, %v849
    %851 = vmatmul.f32.gmra.mxu0 %v627
    %v852 = vpop.f32.mrf.mxu0
    %v853 = vadd.f32 %v472, %v852
    %854 = vmatmul.f32.gmra.mxu0 %v630
    %v855 = vpop.f32.mrf.mxu0
    %v856 = vadd.f32 %v477, %v855
    %857 = vmatmul.f32.gmra.mxu0 %v633
    %v858 = vpop.f32.mrf.mxu0
    %v859 = vadd.f32 %v482, %v858
    %860 = vmatmul.f32.gmra.mxu0 %v636
    %v861 = vpop.f32.mrf.mxu0
    %v862 = vadd.f32 %v487, %v861
    %863 = vmatmul.f32.gmra.mxu0 %v639
    %v864 = vpop.f32.mrf.mxu0
    %v865 = vadd.f32 %v492, %v864
    %866 = vmatmul.f32.gmra.mxu0 %v642
    %v867 = vpop.f32.mrf.mxu0
    %v868 = vadd.f32 %v497, %v867
    %869 = vmatmul.f32.gmra.mxu0 %v645
    %v870 = vpop.f32.mrf.mxu0
    %v871 = vadd.f32 %v502, %v870
    %872 = vmatmul.f32.gmra.mxu0 %v648
    %v873 = vpop.f32.mrf.mxu0
    %v874 = vadd.f32 %v507, %v873
    %875 = vmatmul.f32.gmra.mxu0 %v651
    %v876 = vpop.f32.mrf.mxu0
    %v877 = vadd.f32 %v512, %v876
    %878 = vmatmul.f32.gmra.mxu0 %v654
    %v879 = vpop.f32.mrf.mxu0
    %v880 = vadd.f32 %v517, %v879
    %881 = vmatmul.f32.gmra.mxu0 %v657
    %v882 = vpop.f32.mrf.mxu0
    %v883 = vadd.f32 %v522, %v882
    %884 = vmatmul.f32.gmra.mxu0 %v660
    %v885 = vpop.f32.mrf.mxu0
    %v886 = vadd.f32 %v527, %v885
    %887 = vmatmul.f32.gmra.mxu0 %v663
    %v888 = vpop.f32.mrf.mxu0
    %v889 = vadd.f32 %v532, %v888
    %890 = vmatmul.f32.gmra.mxu0 %v666
    %v891 = vpop.f32.mrf.mxu0
    %v892 = vadd.f32 %v537, %v891
    %893 = vmatmul.f32.gmra.mxu0 %v669
    %v894 = vpop.f32.mrf.mxu0
    %v895 = vadd.f32 %v542, %v894
    %896 = vmatmul.f32.gmra.mxu0 %v672
    %v897 = vpop.f32.mrf.mxu0
    %v898 = vadd.f32 %v547, %v897
    %899 = vmatmul.f32.gmra.mxu0 %v675
    %v900 = vpop.f32.mrf.mxu0
    %v901 = vadd.f32 %v552, %v900
    %902 = vmatmul.f32.gmra.mxu0 %v678
    %v903 = vpop.f32.mrf.mxu0
    %v904 = vadd.f32 %v557, %v903
    %905 = vmatmul.f32.gmra.mxu0 %v681
    %v906 = vpop.f32.mrf.mxu0
    %v907 = vadd.f32 %v562, %v906
    %908 = vmatmul.f32.gmra.mxu0 %v684
    %v909 = vpop.f32.mrf.mxu0
    %v910 = vadd.f32 %v567, %v909
    %911 = vmatmul.f32.gmra.mxu0 %v687
    %v912 = vpop.f32.mrf.mxu0
    %v913 = vadd.f32 %v572, %v912
    %914 = vmatmul.f32.gmra.mxu0 %v690
    %v915 = vpop.f32.mrf.mxu0
    %v916 = vadd.f32 %v577, %v915
    %917 = vmatmul.f32.gmra.mxu0 %v693
    %v918 = vpop.f32.mrf.mxu0
    %v919 = vadd.f32 %v582, %v918
    %920 = vmatmul.f32.gmra.mxu0 %v696
    %v921 = vpop.f32.mrf.mxu0
    %v922 = vadd.f32 %v587, %v921
    %923 = vmatmul.f32.gmra.mxu0 %v699
    %v924 = vpop.f32.mrf.mxu0
    %v925 = vadd.f32 %v592, %v924
    %926 = vmatmul.f32.gmra.mxu0 %v702
    %v927 = vpop.f32.mrf.mxu0
    %v928 = vadd.f32 %v597, %v927
    %929 = vmatmul.f32.gmra.mxu0 %v705
    %v930 = vpop.f32.mrf.mxu0
    %v931 = vadd.f32 %v602, %v930
    %932 = vmatmul.f32.gmra.mxu0 %v708
    %v933 = vpop.f32.mrf.mxu0
    %v934 = vadd.f32 %v607, %v933
    %935 = vmatmul.f32.gmra.mxu0 %v711
    %v936 = vpop.f32.mrf.mxu0
    %v937 = vadd.f32 %v612, %v936
    %938 = vmatmul.f32.gmra.mxu0 %v714
    %v939 = vpop.f32.mrf.mxu0
    %v940 = vadd.f32 %v617, %v939
    %941 = vdwg.mxu0
    %v942 = vmax.f32 %v734, 0.0
    %v943 = vmax.f32 %v847, 0.0
    %v944 = vmax.f32 %v737, 0.0
    %v945 = vmax.f32 %v850, 0.0
    %v946 = vmax.f32 %v740, 0.0
    %v947 = vmax.f32 %v853, 0.0
    %v948 = vmax.f32 %v743, 0.0
    %v949 = vmax.f32 %v856, 0.0
    %v950 = vmax.f32 %v746, 0.0
    %v951 = vmax.f32 %v859, 0.0
    %v952 = vmax.f32 %v749, 0.0
    %v953 = vmax.f32 %v862, 0.0
    %v954 = vmax.f32 %v752, 0.0
    %v955 = vmax.f32 %v865, 0.0
    %v956 = vmax.f32 %v755, 0.0
    %v957 = vmax.f32 %v868, 0.0
    %v958 = vmax.f32 %v758, 0.0
    %v959 = vmax.f32 %v871, 0.0
    %v960 = vmax.f32 %v761, 0.0
    %v961 = vmax.f32 %v874, 0.0
    %v962 = vmax.f32 %v764, 0.0
    %v963 = vmax.f32 %v877, 0.0
    %v964 = vmax.f32 %v767, 0.0
    %v965 = vmax.f32 %v880, 0.0
    %v966 = vmax.f32 %v770, 0.0
    %v967 = vmax.f32 %v883, 0.0
    %v968 = vmax.f32 %v773, 0.0
    %v969 = vmax.f32 %v886, 0.0
    %v970 = vmax.f32 %v776, 0.0
    %v971 = vmax.f32 %v889, 0.0
    %v972 = vmax.f32 %v779, 0.0
    %v973 = vmax.f32 %v892, 0.0
    %v974 = vmax.f32 %v782, 0.0
    %v975 = vmax.f32 %v895, 0.0
    %v976 = vmax.f32 %v785, 0.0
    %v977 = vmax.f32 %v898, 0.0
    %v978 = vmax.f32 %v788, 0.0
    %v979 = vmax.f32 %v901, 0.0
    %v980 = vmax.f32 %v791, 0.0
    %v981 = vmax.f32 %v904, 0.0
    %v982 = vmax.f32 %v794, 0.0
    %v983 = vmax.f32 %v907, 0.0
    %v984 = vmax.f32 %v797, 0.0
    %v985 = vmax.f32 %v910, 0.0
    %v986 = vmax.f32 %v800, 0.0
    %v987 = vmax.f32 %v913, 0.0
    %v988 = vmax.f32 %v803, 0.0
    %v989 = vmax.f32 %v916, 0.0
    %v990 = vmax.f32 %v806, 0.0
    %v991 = vmax.f32 %v919, 0.0
    %v992 = vmax.f32 %v809, 0.0
    %v993 = vmax.f32 %v922, 0.0
    %v994 = vmax.f32 %v812, 0.0
    %v995 = vmax.f32 %v925, 0.0
    %v996 = vmax.f32 %v815, 0.0
    %v997 = vmax.f32 %v928, 0.0
    %v998 = vmax.f32 %v818, 0.0
    %v999 = vmax.f32 %v931, 0.0
    %v1000 = vmax.f32 %v821, 0.0
    %v1001 = vmax.f32 %v934, 0.0
    %v1002 = vmax.f32 %v824, 0.0
    %v1003 = vmax.f32 %v937, 0.0
    %v1004 = vmax.f32 %v827, 0.0
    %v1005 = vmax.f32 %v940, 0.0
    %v1006 = vld [vmem:[%s7] sm:$0xff]
    %v1007 = vld [vmem:[%s7 + $0x8] sm:$0xff]
    %v1008 = vld [vmem:[%s7 + $0x10] sm:$0xff]
    %v1009 = vld [vmem:[%s7 + $0x18] sm:$0xff]
    %v1010 = vld [vmem:[%s7 + $0x20] sm:$0xff]
    %v1011 = vld [vmem:[%s7 + $0x28] sm:$0xff]
    %v1012 = vld [vmem:[%s7 + $0x30] sm:$0xff]
    %v1013 = vld [vmem:[%s7 + $0x38] sm:$0xff]
    %v1014 = vld [vmem:[%s7 + $0x40] sm:$0xff]
    %v1015 = vld [vmem:[%s7 + $0x48] sm:$0xff]
    %v1016 = vld [vmem:[%s7 + $0x50] sm:$0xff]
    %v1017 = vld [vmem:[%s7 + $0x58] sm:$0xff]
    %v1018 = vld [vmem:[%s7 + $0x60] sm:$0xff]
    %v1019 = vld [vmem:[%s7 + $0x68] sm:$0xff]
    %v1020 = vld [vmem:[%s7 + $0x70] sm:$0xff]
    %v1021 = vld [vmem:[%s7 + $0x78] sm:$0xff]
    %v1022 = vld [vmem:[%s8] sm:$0xff]
    %v1023 = vld [vmem:[%s8 + $0x8] sm:$0xff]
    %v1024 = vld [vmem:[%s8 + $0x10] sm:$0xff]
    %v1025 = vld [vmem:[%s8 + $0x18] sm:$0xff]
    %v1026 = vld [vmem:[%s8 + $0x20] sm:$0xff]
    %v1027 = vld [vmem:[%s8 + $0x28] sm:$0xff]
    %v1028 = vld [vmem:[%s8 + $0x30] sm:$0xff]
    %v1029 = vld [vmem:[%s8 + $0x38] sm:$0xff]
    %1031 = vset.pattern.permute.xlu0 0
    %1032 = vperm.xlu0 %1031, %v1022
    %v1033 = vpop.permute.xlu0 %1032
    %1036 = vset.pattern.permute.xlu0 0
    %1037 = vperm.xlu0 %1036, %v1023
    %v1038 = vpop.permute.xlu0 %1037
    %1041 = vset.pattern.permute.xlu0 0
    %1042 = vperm.xlu0 %1041, %v1024
    %v1043 = vpop.permute.xlu0 %1042
    %1046 = vset.pattern.permute.xlu0 0
    %1047 = vperm.xlu0 %1046, %v1025
    %v1048 = vpop.permute.xlu0 %1047
    %1051 = vset.pattern.permute.xlu0 0
    %1052 = vperm.xlu0 %1051, %v1026
    %v1053 = vpop.permute.xlu0 %1052
    %1056 = vset.pattern.permute.xlu0 0
    %1057 = vperm.xlu0 %1056, %v1027
    %v1058 = vpop.permute.xlu0 %1057
    %1061 = vset.pattern.permute.xlu0 0
    %1062 = vperm.xlu0 %1061, %v1028
    %v1063 = vpop.permute.xlu0 %1062
    %1066 = vset.pattern.permute.xlu0 0
    %1067 = vperm.xlu0 %1066, %v1029
    %v1068 = vpop.permute.xlu0 %1067
    %1070 = vmatpush.msra.mxu0 %v972
    %1071 = vmatpush.msra.mxu0 %v970
    %1072 = vmatpush.msra.mxu0 %v968
    %1073 = vmatpush.msra.mxu0 %v966
    %1074 = vmatpush.msra.mxu0 %v964
    %1075 = vmatpush.msra.mxu0 %v962
    %1076 = vmatpush.msra.mxu0 %v960
    %1077 = vmatpush.msra.mxu0 %v958
    %1078 = vmatpush.msra.mxu0 %v956
    %1079 = vmatpush.msra.mxu0 %v954
    %1080 = vmatpush.msra.mxu0 %v952
    %1081 = vmatpush.msra.mxu0 %v950
    %1082 = vmatpush.msra.mxu0 %v948
    %1083 = vmatpush.msra.mxu0 %v946
    %1084 = vmatpush.msra.mxu0 %v944
    %1085 = vmatpush.msra.mxu0 %v942
    %1086 = vmatmul.f32.gmra.mxu0 %v1006
    %v1087 = vpop.f32.mrf.mxu0
    %v1088 = vadd.f32 %v1033, %v1087
    %1089 = vmatmul.f32.gmra.mxu0 %v1008
    %v1090 = vpop.f32.mrf.mxu0
    %v1091 = vadd.f32 %v1038, %v1090
    %1092 = vmatmul.f32.gmra.mxu0 %v1010
    %v1093 = vpop.f32.mrf.mxu0
    %v1094 = vadd.f32 %v1043, %v1093
    %1095 = vmatmul.f32.gmra.mxu0 %v1012
    %v1096 = vpop.f32.mrf.mxu0
    %v1097 = vadd.f32 %v1048, %v1096
    %1098 = vmatmul.f32.gmra.mxu0 %v1014
    %v1099 = vpop.f32.mrf.mxu0
    %v1100 = vadd.f32 %v1053, %v1099
    %1101 = vmatmul.f32.gmra.mxu0 %v1016
    %v1102 = vpop.f32.mrf.mxu0
    %v1103 = vadd.f32 %v1058, %v1102
    %1104 = vmatmul.f32.gmra.mxu0 %v1018
    %v1105 = vpop.f32.mrf.mxu0
    %v1106 = vadd.f32 %v1063, %v1105
    %1107 = vmatmul.f32.gmra.mxu0 %v1020
    %v1108 = vpop.f32.mrf.mxu0
    %v1109 = vadd.f32 %v1068, %v1108
    %1110 = vdwg.mxu0
    %1111 = vmatpush.msra.mxu0 %v1004
    %1112 = vmatpush.msra.mxu0 %v1002
    %1113 = vmatpush.msra.mxu0 %v1000
    %1114 = vmatpush.msra.mxu0 %v998
    %1115 = vmatpush.msra.mxu0 %v996
    %1116 = vmatpush.msra.mxu0 %v994
    %1117 = vmatpush.msra.mxu0 %v992
    %1118 = vmatpush.msra.mxu0 %v990
    %1119 = vmatpush.msra.mxu0 %v988
    %1120 = vmatpush.msra.mxu0 %v986
    %1121 = vmatpush.msra.mxu0 %v984
    %1122 = vmatpush.msra.mxu0 %v982
    %1123 = vmatpush.msra.mxu0 %v980
    %1124 = vmatpush.msra.mxu0 %v978
    %1125 = vmatpush.msra.mxu0 %v976
    %1126 = vmatpush.msra.mxu0 %v974
    %1127 = vmatmul.f32.gmra.mxu0 %v1007
    %v1128 = vpop.f32.mrf.mxu0
    %v1129 = vadd.f32 %v1088, %v1128
    %1130 = vmatmul.f32.gmra.mxu0 %v1009
    %v1131 = vpop.f32.mrf.mxu0
    %v1132 = vadd.f32 %v1091, %v1131
    %1133 = vmatmul.f32.gmra.mxu0 %v1011
    %v1134 = vpop.f32.mrf.mxu0
    %v1135 = vadd.f32 %v1094, %v1134
    %1136 = vmatmul.f32.gmra.mxu0 %v1013
    %v1137 = vpop.f32.mrf.mxu0
    %v1138 = vadd.f32 %v1097, %v1137
    %1139 = vmatmul.f32.gmra.mxu0 %v1015
    %v1140 = vpop.f32.mrf.mxu0
    %v1141 = vadd.f32 %v1100, %v1140
    %1142 = vmatmul.f32.gmra.mxu0 %v1017
    %v1143 = vpop.f32.mrf.mxu0
    %v1144 = vadd.f32 %v1103, %v1143
    %1145 = vmatmul.f32.gmra.mxu0 %v1019
    %v1146 = vpop.f32.mrf.mxu0
    %v1147 = vadd.f32 %v1106, %v1146
    %1148 = vmatmul.f32.gmra.mxu0 %v1021
    %v1149 = vpop.f32.mrf.mxu0
    %v1150 = vadd.f32 %v1109, %v1149
    %1151 = vdwg.mxu0
    %1152 = vmatpush.msra.mxu0 %v973
    %1153 = vmatpush.msra.mxu0 %v971
    %1154 = vmatpush.msra.mxu0 %v969
    %1155 = vmatpush.msra.mxu0 %v967
    %1156 = vmatpush.msra.mxu0 %v965
    %1157 = vmatpush.msra.mxu0 %v963
    %1158 = vmatpush.msra.mxu0 %v961
    %1159 = vmatpush.msra.mxu0 %v959
    %1160 = vmatpush.msra.mxu0 %v957
    %1161 = vmatpush.msra.mxu0 %v955
    %1162 = vmatpush.msra.mxu0 %v953
    %1163 = vmatpush.msra.mxu0 %v951
    %1164 = vmatpush.msra.mxu0 %v949
    %1165 = vmatpush.msra.mxu0 %v947
    %1166 = vmatpush.msra.mxu0 %v945
    %1167 = vmatpush.msra.mxu0 %v943
    %1168 = vmatmul.f32.gmra.mxu0 %v1006
    %v1169 = vpop.f32.mrf.mxu0
    %v1170 = vadd.f32 %v1033, %v1169
    %1171 = vmatmul.f32.gmra.mxu0 %v1008
    %v1172 = vpop.f32.mrf.mxu0
    %v1173 = vadd.f32 %v1038, %v1172
    %1174 = vmatmul.f32.gmra.mxu0 %v1010
    %v1175 = vpop.f32.mrf.mxu0
    %v1176 = vadd.f32 %v1043, %v1175
    %1177 = vmatmul.f32.gmra.mxu0 %v1012
    %v1178 = vpop.f32.mrf.mxu0
    %v1179 = vadd.f32 %v1048, %v1178
    %1180 = vmatmul.f32.gmra.mxu0 %v1014
    %v1181 = vpop.f32.mrf.mxu0
    %v1182 = vadd.f32 %v1053, %v1181
    %1183 = vmatmul.f32.gmra.mxu0 %v1016
    %v1184 = vpop.f32.mrf.mxu0
    %v1185 = vadd.f32 %v1058, %v1184
    %1186 = vmatmul.f32.gmra.mxu0 %v1018
    %v1187 = vpop.f32.mrf.mxu0
    %v1188 = vadd.f32 %v1063, %v1187
    %1189 = vmatmul.f32.gmra.mxu0 %v1020
    %v1190 = vpop.f32.mrf.mxu0
    %v1191 = vadd.f32 %v1068, %v1190
    %1192 = vdwg.mxu0
    %1193 = vmatpush.msra.mxu0 %v1005
    %1194 = vmatpush.msra.mxu0 %v1003
    %1195 = vmatpush.msra.mxu0 %v1001
    %1196 = vmatpush.msra.mxu0 %v999
    %1197 = vmatpush.msra.mxu0 %v997
    %1198 = vmatpush.msra.mxu0 %v995
    %1199 = vmatpush.msra.mxu0 %v993
    %1200 = vmatpush.msra.mxu0 %v991
    %1201 = vmatpush.msra.mxu0 %v989
    %1202 = vmatpush.msra.mxu0 %v987
    %1203 = vmatpush.msra.mxu0 %v985
    %1204 = vmatpush.msra.mxu0 %v983
    %1205 = vmatpush.msra.mxu0 %v981
    %1206 = vmatpush.msra.mxu0 %v979
    %1207 = vmatpush.msra.mxu0 %v977
    %1208 = vmatpush.msra.mxu0 %v975
    %1209 = vmatmul.f32.gmra.mxu0 %v1007
    %v1210 = vpop.f32.mrf.mxu0
    %v1211 = vadd.f32 %v1170, %v1210
    %1212 = vmatmul.f32.gmra.mxu0 %v1009
    %v1213 = vpop.f32.mrf.mxu0
    %v1214 = vadd.f32 %v1173, %v1213
    %1215 = vmatmul.f32.gmra.mxu0 %v1011
    %v1216 = vpop.f32.mrf.mxu0
    %v1217 = vadd.f32 %v1176, %v1216
    %1218 = vmatmul.f32.gmra.mxu0 %v1013
    %v1219 = vpop.f32.mrf.mxu0
    %v1220 = vadd.f32 %v1179, %v1219
    %1221 = vmatmul.f32.gmra.mxu0 %v1015
    %v1222 = vpop.f32.mrf.mxu0
    %v1223 = vadd.f32 %v1182, %v1222
    %1224 = vmatmul.f32.gmra.mxu0 %v1017
    %v1225 = vpop.f32.mrf.mxu0
    %v1226 = vadd.f32 %v1185, %v1225
    %1227 = vmatmul.f32.gmra.mxu0 %v1019
    %v1228 = vpop.f32.mrf.mxu0
    %v1229 = vadd.f32 %v1188, %v1228
    %1230 = vmatmul.f32.gmra.mxu0 %v1021
    %v1231 = vpop.f32.mrf.mxu0
    %v1232 = vadd.f32 %v1191, %v1231
    %1233 = vdwg.mxu0
    %v1234 = vmax.f32 %v1129, 0.0
    %v1235 = vmax.f32 %v1211, 0.0
    %v1236 = vmax.f32 %v1132, 0.0
    %v1237 = vmax.f32 %v1214, 0.0
    %v1238 = vmax.f32 %v1135, 0.0
    %v1239 = vmax.f32 %v1217, 0.0
    %v1240 = vmax.f32 %v1138, 0.0
    %v1241 = vmax.f32 %v1220, 0.0
    %v1242 = vmax.f32 %v1141, 0.0
    %v1243 = vmax.f32 %v1223, 0.0
    %v1244 = vmax.f32 %v1144, 0.0
    %v1245 = vmax.f32 %v1226, 0.0
    %v1246 = vmax.f32 %v1147, 0.0
    %v1247 = vmax.f32 %v1229, 0.0
    %v1248 = vmax.f32 %v1150, 0.0
    %v1249 = vmax.f32 %v1232, 0.0
    %v1250 = vld [vmem:[%s9] sm:$0xff]
    %v1251 = vld [vmem:[%s9 + $0x8] sm:$0xff]
    %v1252 = vld [vmem:[%s9 + $0x10] sm:$0xff]
    %v1253 = vld [vmem:[%s9 + $0x18] sm:$0xff]
    %v1254 = vld [vmem:[%s9 + $0x20] sm:$0xff]
    %v1255 = vld [vmem:[%s9 + $0x28] sm:$0xff]
    %v1256 = vld [vmem:[%s9 + $0x30] sm:$0xff]
    %v1257 = vld [vmem:[%s9 + $0x38] sm:$0xff]
    %1259 = vset.pattern.permute.xlu0 0
    %1260 = vperm.xlu0 %1259, %v1250
    %v1261 = vpop.permute.xlu0 %1260
    %1264 = vset.pattern.permute.xlu0 0
    %1265 = vperm.xlu0 %1264, %v1251
    %v1266 = vpop.permute.xlu0 %1265
    %1269 = vset.pattern.permute.xlu0 0
    %1270 = vperm.xlu0 %1269, %v1252
    %v1271 = vpop.permute.xlu0 %1270
    %1274 = vset.pattern.permute.xlu0 0
    %1275 = vperm.xlu0 %1274, %v1253
    %v1276 = vpop.permute.xlu0 %1275
    %1279 = vset.pattern.permute.xlu0 0
    %1280 = vperm.xlu0 %1279, %v1254
    %v1281 = vpop.permute.xlu0 %1280
    %1284 = vset.pattern.permute.xlu0 0
    %1285 = vperm.xlu0 %1284, %v1255
    %v1286 = vpop.permute.xlu0 %1285
    %1289 = vset.pattern.permute.xlu0 0
    %1290 = vperm.xlu0 %1289, %v1256
    %v1291 = vpop.permute.xlu0 %1290
    %1294 = vset.pattern.permute.xlu0 0
    %1295 = vperm.xlu0 %1294, %v1257
    %v1296 = vpop.permute.xlu0 %1295
    %v1298 = vmul.f32 %v1261, %v1234
    %v1299 = vmul.f32 %v1261, %v1235
    %v1300 = vmul.f32 %v1266, %v1236
    %v1301 = vmul.f32 %v1266, %v1237
    %v1302 = vmul.f32 %v1271, %v1238
    %v1303 = vmul.f32 %v1271, %v1239
    %v1304 = vmul.f32 %v1276, %v1240
    %v1305 = vmul.f32 %v1276, %v1241
    %v1306 = vmul.f32 %v1281, %v1242
    %v1307 = vmul.f32 %v1281, %v1243
    %v1308 = vmul.f32 %v1286, %v1244
    %v1309 = vmul.f32 %v1286, %v1245
    %v1310 = vmul.f32 %v1291, %v1246
    %v1311 = vmul.f32 %v1291, %v1247
    %v1312 = vmul.f32 %v1296, %v1248
    %v1313 = vmul.f32 %v1296, %v1249
    %v1314 = vadd.f32 %v1298, %v1300
    %v1315 = vadd.f32 %v1314, %v1302
    %v1316 = vadd.f32 %v1315, %v1304
    %v1317 = vadd.f32 %v1316, %v1306
    %v1318 = vadd.f32 %v1317, %v1308
    %v1319 = vadd.f32 %v1318, %v1310
    %v1320 = vadd.f32 %v1319, %v1312
    %v1321 = vrot.slane %v1320, 4
    %v1322 = vadd.f32 %v1320, %v1321
    %v1323 = vrot.slane %v1322, 2
    %v1324 = vadd.f32 %v1322, %v1323
    %v1325 = vrot.slane %v1324, 1
    %v1326 = vadd.f32 %v1324, %v1325
    %v1327 = vadd.f32 %v1299, %v1301
    %v1328 = vadd.f32 %v1327, %v1303
    %v1329 = vadd.f32 %v1328, %v1305
    %v1330 = vadd.f32 %v1329, %v1307
    %v1331 = vadd.f32 %v1330, %v1309
    %v1332 = vadd.f32 %v1331, %v1311
    %v1333 = vadd.f32 %v1332, %v1313
    %v1334 = vrot.slane %v1333, 4
    %v1335 = vadd.f32 %v1333, %v1334
    %v1336 = vrot.slane %v1335, 2
    %v1337 = vadd.f32 %v1335, %v1336
    %v1338 = vrot.slane %v1337, 1
    %v1339 = vadd.f32 %v1337, %v1338
    %v1340 = vld [vmem:[#allocation2] sm:$0x1]
    %1342 = vset.pattern.permute.xlu0 0
    %1343 = vperm.xlu0 %1342, %v1340
    %v1344 = vpop.permute.xlu0 %1343
    %v1346 = vperm.slane %v1344, 0
    %v1347 = vadd.f32 %v1326, %v1346
    %v1348 = vadd.f32 %v1339, %v1346
    %v1351 = vrot.slane %v1348, 7
    %vm1352 = vcmask 1040384
    %v1353 = vsel %vm1352, %v1347, %v1351
    %v1355 = vlaneseq
    %vm1356 = vcmp.ge.s32.totalorder %v1355, 0
    %vm1357 = vcmp.lt.s32.totalorder %v1355, 256
    %vm1358 = vmand %vm1356, %vm1357
    %1359 = vst.msk [vmem:[#allocation3] sm:$0x3] %vm1358, %v1353
    // Predicated region
    $region46: #{tpu_custom_call.1} parent=1 // pred_check
      _
    $region47: #{tpu_custom_call.1} parent=1 // pred_check_branch
      %1361 = sbr.rel (0) target = $region49
    $region48: #{tpu_custom_call.1} parent=1 // pred_region
      %1363 = vsyncadd [#allocation4], 0
      %s1365 = sshll.u32 [#allocation3], 4
      %s1366 = int_to_ptr.vmem [resolvable:$true] %s1365
      %s1367 = sshll.u32 %s11, 4
      %s1368 = int_to_ptr.hbm [resolvable:$true] %s1367
      %1370 = dma.vmem_to_hbm [thread:$0]  %s1366, 32, %s1368, [#allocation4]
    $region49: #{tpu_custom_call.1} parent=1 // pred_fallthru
      _
    // Predicated region
    $region50: #{tpu_custom_call.1} parent=1 // pred_check
      _
    $region51: #{tpu_custom_call.1} parent=1 // pred_check_branch
      %1372 = sbr.rel (0) target = $region53
    $region52: #{tpu_custom_call.1} parent=1 // pred_region
      %1374 = dma.done [#allocation4], 32
    $region53: #{tpu_custom_call.1} parent=1 // pred_fallthru
      _
    %1375 = vsyncpa [#allocation4], 1

</llo_original>
